<compile_context>
chip_gen: v5e
topology: v5e:2x2
jax: 0.10.0
libtpu: 0.0.40
codegen_flags: <defaults>
</compile_context>

<pallas_src>
import functools

import jax
import jax.numpy as jnp
from jax.experimental import pallas as pl
from jax.experimental.pallas import tpu as pltpu


def _round_up(x, m):
    return ((x + m - 1) // m) * m


def _distill_kl_row_kernel(ys_ref, yt_ref, rowkl_ref, *, inv_temp):
    """Per-row KL(p_t || p_s) for one (TB, C) batch tile of logits."""
    scale = jnp.float32(inv_temp)  # fold the /T into a single multiply
    ys = ys_ref[...].astype(jnp.float32) * scale
    yt = yt_ref[...].astype(jnp.float32) * scale

    # Student: only the (stable) log-sum-exp is needed.
    ys_shift = ys - jnp.max(ys, axis=-1, keepdims=True)
    ys_lse = jnp.log(jnp.sum(jnp.exp(ys_shift), axis=-1, keepdims=True))

    # Teacher: stable softmax pieces.
    yt_shift = yt - jnp.max(yt, axis=-1, keepdims=True)
    yt_exp = jnp.exp(yt_shift)
    yt_sum = jnp.sum(yt_exp, axis=-1, keepdims=True)

    # sum_c p_t*(log p_t - log p_s)
    #   = (1/yt_sum) * sum_c yt_exp*(yt_shift - ys_shift) + ys_lse - log(yt_sum)
    cross = jnp.sum(yt_exp * (yt_shift - ys_shift), axis=-1, keepdims=True)
    # Exact reciprocal on the tiny [TB,1] vector (approx=True would also work if
    # a ~1e-4 relative tolerance on the loss is acceptable).
    inv_sum = pl.reciprocal(yt_sum, approx=False)
    rowkl_ref[...] = cross * inv_sum + ys_lse - jnp.log(yt_sum)


def distill_kl_loss(y_s, y_t, temperature=4.0, block_rows=None):
    """Pallas TPU implementation of DistillKL.forward(y_s, y_t)."""
    assert y_s.shape == y_t.shape and y_s.ndim == 2
    B, C = y_s.shape
    T = float(temperature)

    # Tile size over the batch: ~1 MiB per f32 tile (bf16 tiles are half that).
    # With 2 inputs x 2 pipeline buffers this stays well under every
    # generation's scoped-VMEM default, v5e/v7x included.
    if block_rows is None:
        target_rows = max(8, (1 << 20) // max(1, 4 * C))
    else:
        target_rows = max(8, int(block_rows))
    TB = min(_round_up(B, 8), _round_up(target_rows, 8))
    B_pad = _round_up(B, TB)
    if B_pad != B:
        # Pad both inputs with identical zero rows: identical student/teacher
        # logits give exactly zero per-row KL, so padding never biases the sum.
        pad = B_pad - B
        y_s = jnp.pad(y_s, ((0, pad), (0, 0)))
        y_t = jnp.pad(y_t, ((0, pad), (0, 0)))

    num_tiles = B_pad // TB
    itemsize = jnp.dtype(y_s.dtype).itemsize

    # TODO(synk): for very small class counts (C << 128) lanes are underused;
    # a lane-dense repack (several rows per vreg + segmented class reduce) would
    # recover full vector utilization but is not implemented here.

    kernel = functools.partial(_distill_kl_row_kernel, inv_temp=1.0 / T)

    cost = pl.CostEstimate(
        flops=10 * B_pad * C,
        transcendentals=2 * B_pad * C + 4 * B_pad,
        bytes_accessed=2 * B_pad * C * itemsize + B_pad * 4,
    )

    row_kl = pl.pallas_call(
        kernel,
        out_shape=jax.ShapeDtypeStruct((B_pad, 1), jnp.float32),
        grid=(num_tiles,),
        in_specs=[
            pl.BlockSpec((TB, C), lambda i: (i, 0)),
            pl.BlockSpec((TB, C), lambda i: (i, 0)),
        ],
        out_specs=pl.BlockSpec((TB, 1), lambda i: (i, 0)),
        compiler_params=pltpu.CompilerParams(
            dimension_semantics=("parallel",),  # independent output blocks
        ),
        cost_estimate=cost,
    )(y_s, y_t)

    # Final (tiny) cross-row reduction + loss scaling in plain JAX.
    return jnp.sum(row_kl) * jnp.float32(T * T) / jnp.float32(B)


def _reference_distill_kl(y_s, y_t, temperature):
    """Pure-JAX reference mirroring the PyTorch math (kl_div semantics)."""
    T = float(temperature)
    log_p_s = jax.nn.log_softmax(y_s.astype(jnp.float32) / T, axis=1)
    log_p_t = jax.nn.log_softmax(y_t.astype(jnp.float32) / T, axis=1)
    p_t = jnp.exp(log_p_t)
    kl = jnp.sum(p_t * (log_p_t - log_p_s))
    return kl * T * T / y_s.shape[0]


if __name__ == "__main__":
    key = jax.random.PRNGKey(0)
    k1, k2, k3, k4 = jax.random.split(key, 4)
    T = 4.0  # distillation temperature (module __init__ arg)

    # Case 1: small f32 logits [batch, num_classes], single tile.
    B, C = 8, 32
    y_s = jax.random.normal(k1, (B, C), dtype=jnp.float32)
    y_t = jax.random.normal(k2, (B, C), dtype=jnp.float32)
    loss = distill_kl_loss(y_s, y_t, temperature=T)
    jax.block_until_ready(loss)
    ref = _reference_distill_kl(y_s, y_t, T)
    assert jnp.allclose(loss, ref, rtol=1e-4, atol=1e-5), (loss, ref)

    # Case 2: bf16 logits, batch not a multiple of the tile -> padding + a
    # multi-step "parallel" grid (exercises the pipelined path).
    B2, C2 = 22, 128
    y_s2 = jax.random.normal(k3, (B2, C2), dtype=jnp.float32).astype(jnp.bfloat16)
    y_t2 = jax.random.normal(k4, (B2, C2), dtype=jnp.float32).astype(jnp.bfloat16)
    loss2 = distill_kl_loss(y_s2, y_t2, temperature=T, block_rows=8)
    jax.block_until_ready(loss2)
    ref2 = _reference_distill_kl(
        y_s2.astype(jnp.float32), y_t2.astype(jnp.float32), T
    )
    assert jnp.allclose(loss2, ref2, rtol=1e-4, atol=1e-5), (loss2, ref2)

    print("KERNEL_OK")
</pallas_src>

<mosaic_0001>
module attributes {stable_mosaic.version = 11 : i64} {
  func.func @_distill_kl_row_kernel(%arg0: i32, %arg1: memref<8x32xf32, #tpu.memory_space<vmem>>, %arg2: memref<8x32xf32, #tpu.memory_space<vmem>>, %arg3: memref<8x1xf32, #tpu.memory_space<vmem>>) attributes {dimension_semantics = [#tpu.dimension_semantics<parallel>], iteration_bounds = array<i64: 1>, scalar_prefetch = 0 : i64, scratch_operands = 0 : i64, tpu.core_type = #tpu.core_type<tc>, window_params = [{transform_indices = @transform_0, window_bounds = array<i64: 8, 32>}, {transform_indices = @transform_1, window_bounds = array<i64: 8, 32>}, {transform_indices = @transform_2, window_bounds = array<i64: 8, 1>}]} {
    %c0 = arith.constant 0 : index
    %c0_0 = arith.constant 0 : index
    %0 = vector.load %arg1[%c0, %c0_0] : memref<8x32xf32, #tpu.memory_space<vmem>>, vector<8x32xf32>
    %cst = arith.constant 2.500000e-01 : f32
    %1 = vector.broadcast %cst : f32 to vector<8x32xf32>
    %2 = arith.mulf %0, %1 : vector<8x32xf32>
    %c0_1 = arith.constant 0 : index
    %c0_2 = arith.constant 0 : index
    %3 = vector.load %arg2[%c0_1, %c0_2] : memref<8x32xf32, #tpu.memory_space<vmem>>, vector<8x32xf32>
    %cst_3 = arith.constant 2.500000e-01 : f32
    %4 = vector.broadcast %cst_3 : f32 to vector<8x32xf32>
    %5 = arith.mulf %3, %4 : vector<8x32xf32>
    %cst_4 = arith.constant dense<0xFF800000> : vector<8xf32>
    %6 = vector.multi_reduction <maximumf>, %2, %cst_4 [1] : vector<8x32xf32> to vector<8xf32>
    %7 = vector.shape_cast %6 : vector<8xf32> to vector<8x1xf32>
    %8 = vector.broadcast %7 : vector<8x1xf32> to vector<8x32xf32>
    %9 = arith.subf %2, %8 : vector<8x32xf32>
    %10 = math.exp %9 : vector<8x32xf32>
    %cst_5 = arith.constant dense<0.000000e+00> : vector<8xf32>
    %11 = vector.multi_reduction <add>, %10, %cst_5 [1] : vector<8x32xf32> to vector<8xf32>
    %12 = vector.shape_cast %11 : vector<8xf32> to vector<8x1xf32>
    %13 = math.log %12 : vector<8x1xf32>
    %cst_6 = arith.constant dense<0xFF800000> : vector<8xf32>
    %14 = vector.multi_reduction <maximumf>, %5, %cst_6 [1] : vector<8x32xf32> to vector<8xf32>
    %15 = vector.shape_cast %14 : vector<8xf32> to vector<8x1xf32>
    %16 = vector.broadcast %15 : vector<8x1xf32> to vector<8x32xf32>
    %17 = arith.subf %5, %16 : vector<8x32xf32>
    %18 = math.exp %17 : vector<8x32xf32>
    %cst_7 = arith.constant dense<0.000000e+00> : vector<8xf32>
    %19 = vector.multi_reduction <add>, %18, %cst_7 [1] : vector<8x32xf32> to vector<8xf32>
    %20 = vector.shape_cast %19 : vector<8xf32> to vector<8x1xf32>
    %21 = arith.subf %17, %9 : vector<8x32xf32>
    %22 = arith.mulf %18, %21 : vector<8x32xf32>
    %cst_8 = arith.constant dense<0.000000e+00> : vector<8xf32>
    %23 = vector.multi_reduction <add>, %22, %cst_8 [1] : vector<8x32xf32> to vector<8xf32>
    %24 = vector.shape_cast %23 : vector<8xf32> to vector<8x1xf32>
    %25 = tpu.reciprocal %20 : vector<8x1xf32> -> vector<8x1xf32>
    %26 = arith.mulf %24, %25 : vector<8x1xf32>
    %27 = arith.addf %26, %13 : vector<8x1xf32>
    %28 = math.log %20 : vector<8x1xf32>
    %29 = arith.subf %27, %28 : vector<8x1xf32>
    %c0_9 = arith.constant 0 : index
    %c0_10 = arith.constant 0 : index
    %30 = vector.load %arg3[%c0_9, %c0_10] : memref<8x1xf32, #tpu.memory_space<vmem>>, vector<8x1xf32>
    tpu.vector_store %arg3[%c0_9, %c0_10], %29 {strides = array<i32>} : memref<8x1xf32, #tpu.memory_space<vmem>>, vector<8x1xf32>,
    return
  }
  func.func @transform_0(%arg0: i32) -> (i32, i32) {
    %c0_i32 = arith.constant 0 : i32
    %c0_i32_0 = arith.constant 0 : i32
    return %arg0, %c0_i32 : i32, i32
  }
  func.func @transform_1(%arg0: i32) -> (i32, i32) {
    %c0_i32 = arith.constant 0 : i32
    %c0_i32_0 = arith.constant 0 : i32
    return %arg0, %c0_i32 : i32, i32
  }
  func.func @transform_2(%arg0: i32) -> (i32, i32) {
    %c0_i32 = arith.constant 0 : i32
    %c0_i32_0 = arith.constant 0 : i32
    return %arg0, %c0_i32 : i32, i32
  }
}

</mosaic_0001>

<llo_original>
// kernel: tpu_custom_call.1
$region0: #{tpu_custom_call.1}
  #allocation0 [shape = 'u32[]', space=smem, size = 0x4, offset = 0x4, fixed_abs, tag = 'smem constant byte address 0x4 - core index']
  #allocation1 [shape = 'u32[72,128]{1,0:T(1,128)}', space=vmem, size = 0x9000, scoped, tag = 'internal scratch']
  %s0 = inlined_call_operand.hbm [shape: f32[8,32], index: 0, kind: input, shape index: {}]
  %s1 = inlined_call_operand.hbm [shape: f32[8,32], index: 1, kind: input, shape index: {}]
  %s2 = inlined_call_operand.vmem [shape: f32[8,1], index: 2, kind: output, shape index: {}]
  %s3 = sld [smem:[#allocation0]]
  $region26: #{tpu_custom_call.1} parent=0
    _
  %s5 = ssub.s32 1, %s3
  %s6 = scalar_select 0, %s5, %s3
  $region1: #{tpu_custom_call.1} parent=0
    #allocation2 [shape = 'u8[4096]{0}', space=vmem, size = 0x1000, scoped, tag = 'input window, operand 0, single buffered']
    #allocation3 [shape = 's32[1]{0}', space=sflag, size = 0x4, scoped, tag = 'scoped memory for tpu_custom_call.1']
    #allocation4 [shape = 'u8[4096]{0}', space=vmem, size = 0x1000, scoped, tag = 'input window, operand 1, single buffered']
    #allocation5 [shape = 's32[1]{0}', space=sflag, size = 0x4, scoped, tag = 'scoped memory for tpu_custom_call.1']
    %7 = vsyncpa [#allocation3], 0
    %8 = vsyncpa [#allocation5], 0
    // Predicated region
    $region2: #{tpu_custom_call.1} parent=1 // pred_check
      _
    $region3: #{tpu_custom_call.1} parent=1 // pred_check_branch
      %10 = sbr.rel (0) target = $region5
    $region4: #{tpu_custom_call.1} parent=1 // pred_region
      %12 = vsyncadd [#allocation3], 0
      %s14 = sshll.u32 %s0, 4
      %s15 = int_to_ptr.hbm [resolvable:$true] %s14
      %s16 = sshll.u32 [#allocation2], 4
      %s17 = int_to_ptr.vmem [resolvable:$true] %s16
      %19 = dma.hbm_to_vmem [thread:$0]  %s15, 128, %s17, [#allocation3]
    $region5: #{tpu_custom_call.1} parent=1 // pred_fallthru
      _
    // Predicated region
    $region6: #{tpu_custom_call.1} parent=1 // pred_check
      _
    $region7: #{tpu_custom_call.1} parent=1 // pred_check_branch
      %21 = sbr.rel (0) target = $region9
    $region8: #{tpu_custom_call.1} parent=1 // pred_region
      %23 = vsyncadd [#allocation5], 0
      %s25 = sshll.u32 %s1, 4
      %s26 = int_to_ptr.hbm [resolvable:$true] %s25
      %s27 = sshll.u32 [#allocation4], 4
      %s28 = int_to_ptr.vmem [resolvable:$true] %s27
      %30 = dma.hbm_to_vmem [thread:$0]  %s26, 128, %s28, [#allocation5]
    $region9: #{tpu_custom_call.1} parent=1 // pred_fallthru
      _
    // Predicated region
    $region10: #{tpu_custom_call.1} parent=1 // pred_check
      _
    $region11: #{tpu_custom_call.1} parent=1 // pred_check_branch
      %32 = sbr.rel (0) target = $region13
    $region12: #{tpu_custom_call.1} parent=1 // pred_region
      %34 = dma.done [#allocation3], 128
    $region13: #{tpu_custom_call.1} parent=1 // pred_fallthru
      _
    // Predicated region
    $region14: #{tpu_custom_call.1} parent=1 // pred_check
      _
    $region15: #{tpu_custom_call.1} parent=1 // pred_check_branch
      %36 = sbr.rel (0) target = $region17
    $region16: #{tpu_custom_call.1} parent=1 // pred_region
      %38 = dma.done [#allocation5], 128
    $region17: #{tpu_custom_call.1} parent=1 // pred_fallthru
      _
    %v39 = vld [vmem:[#allocation2] sm:$0xff]
    %v40 = vmul.f32 %v39, 0.25
    %v41 = vld [vmem:[#allocation4] sm:$0xff]
    %v42 = vmul.f32 %v41, 0.25
    %vm43 = vcmask 261120
    %v44 = vsel %vm43, %v40, -inf
    %45 = vmax.xlane.f32.xlu0 %v44
    %v46 = vpop.xlane.xlu0 %45
    %v47 = vsub.f32 %v40, %v46
    %v48 = vmul.f32 %v47, 1.442695
    %v49 = vpow.pop %v48
    %v50 = vsel %vm43, %v49, 0.0
    %51 = vadd.xlane.f32.xlu0 %v50
    %v52 = vpop.xlane.xlu0 %51
    %v53 = vlog2.pop %v52
    %v54 = vmul.f32 %v53, 0.6931472
    %v55 = vsel %vm43, %v42, -inf
    %56 = vmax.xlane.f32.xlu0 %v55
    %v57 = vpop.xlane.xlu0 %56
    %v58 = vsub.f32 %v42, %v57
    %v59 = vmul.f32 %v58, 1.442695
    %v60 = vpow.pop %v59
    %v61 = vsel %vm43, %v60, 0.0
    %62 = vadd.xlane.f32.xlu0 %v61
    %v63 = vpop.xlane.xlu0 %62
    %v64 = vsub.f32 %v58, %v47
    %v65 = vmul.f32 %v60, %v64
    %v66 = vsel %vm43, %v65, 0.0
    %67 = vadd.xlane.f32.xlu0 %v66
    %v68 = vpop.xlane.xlu0 %67
    %v69 = vrcp.pop %v63
    %v70 = vmul.f32 %v63, %v69
    %v71 = vsub.f32 1.0, %v70
    %v72 = vmul.f32 %v69, %v71
    %v73 = vadd.f32 %v69, %v72
    %vm74 = vweird.f32 %v63
    %vm75 = vweird.f32 %v69
    %vm76 = vmor %vm74, %vm75
    %v77 = vsel %vm76, %v69, %v73
    %v78 = vand.u32 2147483647, %v63
    %vm79 = vcmp.eq.f32.partialorder %v78, 8.507059e+37
    %v80 = vand.u32 %v63, 2147483648
    %v81 = vor.u32 1.1754944e-38, %v80
    %v82 = vsel %vm79, %v81, %v77
    %v83 = vmul.f32 %v68, %v82
    %v84 = vadd.f32 %v83, %v54
    %v85 = vlog2.pop %v63
    %v86 = vmul.f32 %v85, 0.6931472
    %v87 = vsub.f32 %v84, %v86
    %vm88 = vcmask 7168
    %89 = vst.msk [vmem:[%s2] sm:$0xff] %vm88, %v87
    // Predicated region
    $region18: #{tpu_custom_call.1} parent=1 // pred_check
      _
    $region19: #{tpu_custom_call.1} parent=1 // pred_check_branch
      %91 = sbr.rel (0) target = $region21
    $region20: #{tpu_custom_call.1} parent=1 // pred_region
      _
    $region21: #{tpu_custom_call.1} parent=1 // pred_fallthru
      _
    // Predicated region
    $region22: #{tpu_custom_call.1} parent=1 // pred_check
      _
    $region23: #{tpu_custom_call.1} parent=1 // pred_check_branch
      %93 = sbr.rel (0) target = $region25
    $region24: #{tpu_custom_call.1} parent=1 // pred_region
      _
    $region25: #{tpu_custom_call.1} parent=1 // pred_fallthru
      _
    %94 = vsyncpa [#allocation3], 1
    %95 = vsyncpa [#allocation5], 1

</llo_original>
